<compile_context>
chip_gen: v7x
topology: tpu7x:2x2x1
jax: 0.10.0
libtpu: 0.0.40
codegen_flags: <defaults>
</compile_context>

<pallas_src>
import jax
import jax.numpy as jnp
from jax.experimental import pallas as pl
from jax.experimental.pallas import tpu as pltpu

EPS = 1e-5        # nn.InstanceNorm2d default eps
NHIDDEN = 128     # fixed by the module (nhidden = 128)
KS = 3            # 'spadeinstance3x3' -> 3x3 convs, padding 1


# ---------------------------------------------------------------- Pallas kernels
def _mlp_shared_kernel(p_ref, w_ref, b_ref, o_ref):
    # p_ref: (1, TW, KFP) bf16   w_ref: (KFP, 128) bf16   b_ref: (1, 128) f32
    acc = jnp.dot(p_ref[0], w_ref[...], preferred_element_type=jnp.float32)
    o_ref[0] = jnp.maximum(acc + b_ref[...], 0.0).astype(o_ref.dtype)


def _spade_affine_kernel(x_ref, mean_ref, rstd_ref, actv_hbm, w_ref, b_ref,
                         o_ref, win_ref):
    # x_ref:    (1, C, TW)  f32   lane-dense NCHW slab of the normalized input
    # mean/rstd:(1, C, 1)   f32   per-(n,c) instance-norm statistics
    # actv_hbm: (N, H+2, W+2, 128) bf16 in HBM (manual halo DMA)
    # w_ref:    (9, 128, 2C) bf16 fused [gamma|beta] conv weights per tap
    # b_ref:    (2C, 1)     f32   fused biases
    # o_ref:    (1, C, TW)  f32   lane-dense output (== NCHW)
    # win_ref:  (TH+2, W+2, 128) bf16 VMEM scratch for the haloed window
    thp2, wp2, nh = win_ref.shape
    th, w = thp2 - 2, wp2 - 2
    tw = th * w
    c = o_ref.shape[1]

    n = pl.program_id(0)
    r0 = pl.multiple_of(pl.program_id(1) * th, th)

    # Haloed activation window: HBM -> VMEM.
    # TODO(synk): double-buffer this DMA with make_async_copy to overlap it
    # with the 9 tap matmuls of the previous tile.
    pltpu.sync_copy(actv_hbm.at[n, pl.ds(r0, thp2)], win_ref)

    win = win_ref[...]                                   # (TH+2, W+2, 128) bf16
    wall = w_ref[...]                                    # (9, 128, 2C) bf16

    # 3x3 conv as 9 shifted matmuls, fused gamma/beta output (2C lanes).
    acc = jnp.zeros((tw, 2 * c), jnp.float32)
    for t in range(KS * KS):
        dy, dx = divmod(t, KS)
        tap = win[dy:dy + th, dx:dx + w, :].reshape(tw, nh)
        acc = acc + jnp.dot(tap, wall[t], preferred_element_type=jnp.float32)

    gb = acc.T + b_ref[...]                              # (2C, TW), lane-dense
    gamma = gb[:c, :]
    beta = gb[c:, :]

    x = x_ref[0]                                         # (C, TW)
    normalized = (x - mean_ref[0]) * rstd_ref[0]         # instance norm (stats precomputed)
    o_ref[0] = (normalized * (1.0 + gamma) + beta).astype(o_ref.dtype)


# ---------------------------------------------------------------- JAX glue
def _nearest_resize_nhwc(seg, H, W):
    # matches torch F.interpolate(mode='nearest'): src = floor(dst * in / out)
    N, Hs, Ws, C = seg.shape
    ih = (jnp.arange(H) * Hs) // H
    iw = (jnp.arange(W) * Ws) // W
    return seg[:, ih][:, :, iw]


def _im2col_3x3(x):
    # x: (N, H, W, C) -> (N, H*W, 9*C), pad=1, feature order (ky, kx, cin)
    N, H, W, C = x.shape
    xp = jnp.pad(x, ((0, 0), (1, 1), (1, 1), (0, 0)))
    cols = [xp[:, dy:dy + H, dx:dx + W, :] for dy in range(KS) for dx in range(KS)]
    return jnp.concatenate(cols, axis=-1).reshape(N, H * W, KS * KS * C)


def _pick_tile_rows(H, W):
    # rows per spatial tile: want H % TH == 0 and (TH*W) % 128 == 0 (lane-dense
    # blocks); fall back to the whole sample if no such TH exists.
    for th in (8, 16, 32, 4, 64, 2, 1):
        if th <= H and H % th == 0 and (th * W) % 128 == 0:
            return th
    return H


def spade_forward(x_nchw, seg_nchw, params):
    w_sh, b_sh = params["w_shared"], params["b_shared"]   # (3,3,Cl,128), (128,)
    w_g, b_g = params["w_gamma"], params["b_gamma"]       # (3,3,128,C),  (C,)
    w_b, b_b = params["w_beta"], params["b_beta"]

    N, C, H, W = x_nchw.shape
    Cl = seg_nchw.shape[1]
    HW = H * W
    NH = NHIDDEN

    TH = _pick_tile_rows(H, W)        # image rows per grid step
    TW = TH * W                       # flattened pixels per grid step
    n_sp = HW // TW

    cparams = pltpu.CompilerParams(
        dimension_semantics=("parallel", "parallel"),
        vmem_limit_bytes=32 * 1024 * 1024)

    # ---- instance-norm statistics (cheap pre-pass, plain XLA) ----
    xf = x_nchw.astype(jnp.float32)
    mean = jnp.mean(xf, axis=(2, 3), keepdims=True)
    var = jnp.mean(jnp.square(xf - mean), axis=(2, 3), keepdims=True)  # biased
    rstd = jax.lax.rsqrt(var + EPS)
    x_flat = xf.reshape(N, C, HW)                      # lane-dense NCHW slab
    mean3 = mean.reshape(N, C, 1)
    rstd3 = rstd.reshape(N, C, 1)

    # ---- segmap: nearest resize + im2col, feature dim padded to 128-multiple ----
    seg = jnp.transpose(seg_nchw, (0, 2, 3, 1)).astype(jnp.float32)
    seg = _nearest_resize_nhwc(seg, H, W)
    patches = _im2col_3x3(seg)                         # (N, HW, 9*Cl)
    KF = KS * KS * Cl
    KFP = pl.cdiv(KF, 128) * 128
    patches = jnp.pad(patches, ((0, 0), (0, 0), (0, KFP - KF))).astype(jnp.bfloat16)
    w_sh2 = jnp.pad(w_sh.reshape(KF, NH), ((0, KFP - KF), (0, 0))).astype(jnp.bfloat16)
    b_sh2 = b_sh.reshape(1, NH).astype(jnp.float32)

    # ---- kernel 1: mlp_shared conv3x3 + bias + ReLU (bf16 activations) ----
    actv = pl.pallas_call(
        _mlp_shared_kernel,
        out_shape=jax.ShapeDtypeStruct((N, HW, NH), jnp.bfloat16),
        grid=(N, n_sp),
        in_specs=[
            pl.BlockSpec((1, TW, KFP), lambda n, i: (n, i, 0)),
            pl.BlockSpec((KFP, NH), lambda n, i: (0, 0)),
            pl.BlockSpec((1, NH), lambda n, i: (0, 0)),
        ],
        out_specs=pl.BlockSpec((1, TW, NH), lambda n, i: (n, i, 0)),
        compiler_params=cparams,
    )(patches, w_sh2, b_sh2)

    # spatially pre-pad the activation once (halo source for kernel 2)
    actv_pad = jnp.pad(actv.reshape(N, H, W, NH),
                       ((0, 0), (1, 1), (1, 1), (0, 0)))      # (N, H+2, W+2, 128) bf16

    # fused gamma/beta weights: (3,3,128,2C) -> (9, 128, 2C)
    wgb = jnp.concatenate([w_g, w_b], axis=-1).reshape(KS * KS, NH, 2 * C)
    wgb = wgb.astype(jnp.bfloat16)
    bgb = jnp.concatenate([b_g, b_b]).reshape(2 * C, 1).astype(jnp.float32)

    # ---- kernel 2: halo DMA + 9 shifted matmuls + instance-norm affine fuse ----
    out_flat = pl.pallas_call(
        _spade_affine_kernel,
        out_shape=jax.ShapeDtypeStruct((N, C, HW), jnp.float32),
        grid=(N, n_sp),
        in_specs=[
            pl.BlockSpec((1, C, TW), lambda n, i: (n, 0, i)),
            pl.BlockSpec((1, C, 1), lambda n, i: (n, 0, 0)),
            pl.BlockSpec((1, C, 1), lambda n, i: (n, 0, 0)),
            pl.BlockSpec(memory_space=pl.ANY),        # padded actv: manual halo DMA
            pl.BlockSpec((KS * KS, NH, 2 * C), lambda n, i: (0, 0, 0)),
            pl.BlockSpec((2 * C, 1), lambda n, i: (0, 0)),
        ],
        out_specs=pl.BlockSpec((1, C, TW), lambda n, i: (n, 0, i)),
        scratch_shapes=[pltpu.VMEM((TH + 2, W + 2, NH), jnp.bfloat16)],
        compiler_params=cparams,
    )(x_flat, mean3, rstd3, actv_pad, wgb, bgb)

    return out_flat.reshape(N, C, H, W)                       # already NCHW


# ---------------------------------------------------------------- pure-JAX reference
def spade_reference(x_nchw, seg_nchw, params):
    x = jnp.transpose(x_nchw, (0, 2, 3, 1))
    seg = jnp.transpose(seg_nchw, (0, 2, 3, 1))
    N, H, W, C = x.shape
    seg = _nearest_resize_nhwc(seg, H, W)

    def conv(inp, w, b):
        out = jax.lax.conv_general_dilated(
            inp, w, (1, 1), "SAME", dimension_numbers=("NHWC", "HWIO", "NHWC"))
        return out + b

    actv = jax.nn.relu(conv(seg, params["w_shared"], params["b_shared"]))
    gamma = conv(actv, params["w_gamma"], params["b_gamma"])
    beta = conv(actv, params["w_beta"], params["b_beta"])

    mean = jnp.mean(x, axis=(1, 2), keepdims=True)
    var = jnp.mean(jnp.square(x - mean), axis=(1, 2), keepdims=True)
    normalized = (x - mean) * jax.lax.rsqrt(var + EPS)
    out = normalized * (1.0 + gamma) + beta
    return jnp.transpose(out, (0, 3, 1, 2))


# ---------------------------------------------------------------- main
if __name__ == "__main__":
    # config_text = 'spadeinstance3x3', norm_nc = 4, label_nc = 3
    N, norm_nc, label_nc = 2, 4, 3
    H = W = 16
    Hs = Ws = 8  # segmap is lower-res; nearest-upsampled to x's spatial size

    key = jax.random.PRNGKey(0)
    k = jax.random.split(key, 8)
    x = jax.random.normal(k[0], (N, norm_nc, H, W), jnp.float32)
    segmap = jax.random.normal(k[1], (N, label_nc, Hs, Ws), jnp.float32)

    # deterministic synthetic parameters (HWIO conv weights)
    params = {
        "w_shared": 0.05 * jax.random.normal(k[2], (KS, KS, label_nc, NHIDDEN), jnp.float32),
        "b_shared": 0.05 * jax.random.normal(k[3], (NHIDDEN,), jnp.float32),
        "w_gamma": 0.05 * jax.random.normal(k[4], (KS, KS, NHIDDEN, norm_nc), jnp.float32),
        "b_gamma": 0.05 * jax.random.normal(k[5], (norm_nc,), jnp.float32),
        "w_beta": 0.05 * jax.random.normal(k[6], (KS, KS, NHIDDEN, norm_nc), jnp.float32),
        "b_beta": 0.05 * jax.random.normal(k[7], (norm_nc,), jnp.float32),
    }

    out = jax.block_until_ready(spade_forward(x, segmap, params))
    ref = jax.block_until_ready(spade_reference(x, segmap, params))

    assert out.shape == (N, norm_nc, H, W)
    assert jnp.allclose(out, ref, atol=2e-2, rtol=2e-2), float(jnp.max(jnp.abs(out - ref)))
    print("KERNEL_OK")
</pallas_src>

<mosaic_0001>
module attributes {stable_mosaic.version = 11 : i64} {
  func.func @_mlp_shared_kernel(%arg0: i32, %arg1: i32, %arg2: memref<1x128x128xbf16, #tpu.memory_space<vmem>>, %arg3: memref<128x128xbf16, #tpu.memory_space<vmem>>, %arg4: memref<1x128xf32, #tpu.memory_space<vmem>>, %arg5: memref<1x128x128xbf16, #tpu.memory_space<vmem>>) attributes {dimension_semantics = [#tpu.dimension_semantics<parallel>, #tpu.dimension_semantics<parallel>], iteration_bounds = array<i64: 2, 2>, scalar_prefetch = 0 : i64, scratch_operands = 0 : i64, tpu.core_type = #tpu.core_type<tc>, window_params = [{transform_indices = @transform_0, window_bounds = array<i64: 1, 128, 128>}, {pipeline_mode = #tpu.pipeline_mode<synchronous>, transform_indices = @transform_1, window_bounds = array<i64: 128, 128>}, {pipeline_mode = #tpu.pipeline_mode<synchronous>, transform_indices = @transform_2, window_bounds = array<i64: 1, 128>}, {transform_indices = @transform_3, window_bounds = array<i64: 1, 128, 128>}]} {
    %c0 = arith.constant 0 : index
    %c0_0 = arith.constant 0 : index
    %c0_1 = arith.constant 0 : index
    %0 = vector.load %arg2[%c0, %c0_0, %c0_1] : memref<1x128x128xbf16, #tpu.memory_space<vmem>>, vector<1x128x128xbf16>
    %1 = vector.shape_cast %0 : vector<1x128x128xbf16> to vector<128x128xbf16>
    %c0_2 = arith.constant 0 : index
    %c0_3 = arith.constant 0 : index
    %2 = vector.load %arg3[%c0_2, %c0_3] : memref<128x128xbf16, #tpu.memory_space<vmem>>, vector<128x128xbf16>
    %cst = arith.constant dense<0.000000e+00> : vector<128x128xf32>
    %3 = tpu.matmul %1, %2, %cst {dimension_numbers = #tpu.dot_dimension_numbers<[1], [0], [0], [1], [0, 0, 1, 1], [], []>} : vector<128x128xbf16>, vector<128x128xbf16>, vector<128x128xf32> -> vector<128x128xf32>
    %c0_4 = arith.constant 0 : index
    %c0_5 = arith.constant 0 : index
    %4 = vector.load %arg4[%c0_4, %c0_5] : memref<1x128xf32, #tpu.memory_space<vmem>>, vector<1x128xf32>
    %5 = vector.broadcast %4 : vector<1x128xf32> to vector<128x128xf32>
    %6 = arith.addf %3, %5 : vector<128x128xf32>
    %cst_6 = arith.constant 0.000000e+00 : f32
    %7 = vector.broadcast %cst_6 : f32 to vector<128x128xf32>
    %8 = arith.maximumf %6, %7 : vector<128x128xf32>
    %9 = arith.truncf %8 : vector<128x128xf32> to vector<128x128xbf16>
    %c0_7 = arith.constant 0 : index
    %c0_8 = arith.constant 0 : index
    %c0_9 = arith.constant 0 : index
    %10 = vector.load %arg5[%c0_7, %c0_8, %c0_9] : memref<1x128x128xbf16, #tpu.memory_space<vmem>>, vector<1x128x128xbf16>
    %11 = vector.shape_cast %10 : vector<1x128x128xbf16> to vector<128x128xbf16>
    %12 = vector.shape_cast %9 : vector<128x128xbf16> to vector<1x128x128xbf16>
    tpu.vector_store %arg5[%c0_7, %c0_8, %c0_9], %12 {strides = array<i32>} : memref<1x128x128xbf16, #tpu.memory_space<vmem>>, vector<1x128x128xbf16>,
    return
  }
  func.func @transform_0(%arg0: i32, %arg1: i32) -> (i32, i32, i32) {
    %c0_i32 = arith.constant 0 : i32
    %c0_i32_0 = arith.constant 0 : i32
    return %arg0, %arg1, %c0_i32 : i32, i32, i32
  }
  func.func @transform_1(%arg0: i32, %arg1: i32) -> (i32, i32) {
    %c0_i32 = arith.constant 0 : i32
    %c0_i32_0 = arith.constant 0 : i32
    %c0_i32_1 = arith.constant 0 : i32
    return %c0_i32, %c0_i32_0 : i32, i32
  }
  func.func @transform_2(%arg0: i32, %arg1: i32) -> (i32, i32) {
    %c0_i32 = arith.constant 0 : i32
    %c0_i32_0 = arith.constant 0 : i32
    %c0_i32_1 = arith.constant 0 : i32
    return %c0_i32, %c0_i32_0 : i32, i32
  }
  func.func @transform_3(%arg0: i32, %arg1: i32) -> (i32, i32, i32) {
    %c0_i32 = arith.constant 0 : i32
    %c0_i32_0 = arith.constant 0 : i32
    return %arg0, %arg1, %c0_i32 : i32, i32, i32
  }
}

</mosaic_0001>

<llo_original>
// kernel: tpu_custom_call.1
$region0: #{tpu_custom_call.1}
  #allocation0 [shape = 'u32[]', space=smem, size = 0x4, offset = 0x4, fixed_abs, tag = 'smem constant byte address 0x4 - core index']
  #allocation1 [shape = 'u32[144,128]{1,0:T(1,128)}', space=vmem, size = 0x12000, scoped, tag = 'internal scratch']
  %s0 = inlined_call_operand.hbm [shape: bf16[2,256,128], index: 0, kind: input, shape index: {}]
  %s1 = inlined_call_operand.hbm [shape: bf16[128,128], index: 1, kind: input, shape index: {}]
  %s2 = inlined_call_operand.vmem [shape: f32[1,128], index: 2, kind: input, shape index: {}]
  %s3 = inlined_call_operand.hbm [shape: bf16[2,256,128], index: 3, kind: output, shape index: {}]
  %s4 = sld [smem:[#allocation0]]
  $region53: #{tpu_custom_call.1} parent=0
    _
  %s6 = ssub.s32 1, %s4
  %s7 = scalar_select 0, %s6, %s4
  $region1: #{tpu_custom_call.1} parent=0
    #allocation2 [shape = 'u8[65536]{0}', space=vmem, size = 0x10000, scoped, tag = 'input window, operand 0']
    #allocation3 [shape = 's32[2]{0}', space=sflag, size = 0x8, scoped, tag = 'scoped memory for tpu_custom_call.1']
    #allocation4 [shape = 's32[2]{0}', space=sflag, size = 0x8, scoped, tag = 'scoped memory for tpu_custom_call.1']
    #allocation5 [shape = 'u8[32768]{0}', space=vmem, size = 0x8000, scoped, tag = 'input window, operand 1, single buffered']
    #allocation6 [shape = 's32[1]{0}', space=sflag, size = 0x4, scoped, tag = 'scoped memory for tpu_custom_call.1']
    #allocation7 [shape = 'u8[65536]{0}', space=vmem, size = 0x10000, scoped, tag = 'output window, operand 0']
    %8 = vsyncpa [#allocation3], 0
    %s9 = scalar_lea.sflag [#allocation3], 1
    %10 = vsyncpa %s9, 0
    %11 = vsyncpa [#allocation6], 0
    %12 = vsyncpa [#allocation4], 0
    %s13 = scalar_lea.sflag [#allocation4], 1
    %14 = vsyncpa %s13, 0
    loop: start=0, step=1, limit=6
    $region2: #{tpu_custom_call.1} parent=1 // loop_pre_header
      _
    $region3: #{tpu_custom_call.1} parent=1 // loop_header
      %s16 = sphi 0, %s20
      %p17 = scmp.ge.s32.totalorder %s16, 6
      %s23 = sphi 0, %s35
      %s24 = sphi 0, %s31
      %s25 = sphi 0, %s23
      %s26 = sphi 0, %s24
      %s27 = sphi 0, %s25
      %s28 = sphi 0, %s26
      %s40 = sphi 0, %s42
      %s43 = sphi 0, %s40
      %s44 = sphi 0, %s43
      %s60 = sphi 0, %s44
      %s64 = sphi 0, %s64
      %s66 = sphi 0, %s64
      %s67 = sphi 0, %s66
      %s81 = sphi 0, %s67
      %s85 = sphi 0, %s85
      %s87 = sphi 0, %s85
      %s88 = sphi 0, %s87
      %s102 = sphi 0, %s88
      %s110 = sphi 0, %s112
      %s113 = sphi 0, %s110
      %s114 = sphi 0, %s113
      %s130 = sphi 0, %s114
    $region4: #{tpu_custom_call.1} parent=1 // loop_header_branch
      %19 = sbr.rel (%p17) target = $region8
    $region5: #{tpu_custom_call.1} parent=1 // loop_body
      %s21 = ssub.s32 %s16, 1
      %s22 = ssub.s32 %s16, 2
      %s29 = sadd.s32 1, %s24
      %p30 = scmp.ge.s32.totalorder %s29, 2
      %s31 = scalar_select %p30, 0, %s29
      %s32 = sadd.s32 1, %s23
      %s33 = scalar_select %p30, %s32, %s23
      %p34 = scmp.ge.s32.totalorder %s33, 2
      %s35 = scalar_select %p34, 0, %s33
      %s36 = ssub.s32 %s23, %s35
      %s37 = ssub.s32 %s24, %s31
      %s38 = sor.u32 %s36, %s37
      %p39 = scmp.eq.s32.totalorder %s38, 0
      %s41 = sadd.s32 %s40, 1
      %s42 = scalar_select %p39, %s40, %s41
      %p45 = pneg %p39
      %p46 = scmp.eq.s32.totalorder %s16, 3
      %p47 = por %p45, %p46
      %p48 = scmp.ne.s32.totalorder %s40, %s43
      %p49 = scmp.eq.s32.totalorder %s16, 0
      %p50 = por %p48, %p49
      %p51 = scmp.ne.s32.totalorder %s40, %s43
      %p52 = scmp.eq.s32.totalorder %s21, 3
      %p53 = por %p51, %p52
      %p54 = scmp.ne.s32.totalorder %s43, %s44
      %p55 = scmp.eq.s32.totalorder %s21, 0
      %p56 = por %p54, %p55
      %p57 = scmp.ne.s32.totalorder %s43, %s44
      %p58 = scmp.eq.s32.totalorder %s22, 3
      %p59 = por %p57, %p58
      %p61 = scmp.ne.s32.totalorder %s44, %s60
      %p62 = scmp.eq.s32.totalorder %s22, 0
      %p63 = por %p61, %p62
      %s65 = sadd.s32 %s64, 1
      %p68 = scmp.eq.s32.totalorder %s16, 3
      %p69 = scmp.ne.s32.totalorder %s64, %s66
      %p70 = scmp.eq.s32.totalorder %s16, 0
      %p71 = por %p69, %p70
      %p72 = scmp.ne.s32.totalorder %s64, %s66
      %p73 = scmp.eq.s32.totalorder %s21, 3
      %p74 = por %p72, %p73
      %p75 = scmp.ne.s32.totalorder %s66, %s67
      %p76 = scmp.eq.s32.totalorder %s21, 0
      %p77 = por %p75, %p76
      %p78 = scmp.ne.s32.totalorder %s66, %s67
      %p79 = scmp.eq.s32.totalorder %s22, 3
      %p80 = por %p78, %p79
      %p82 = scmp.ne.s32.totalorder %s67, %s81
      %p83 = scmp.eq.s32.totalorder %s22, 0
      %p84 = por %p82, %p83
      %s86 = sadd.s32 %s85, 1
      %p89 = scmp.eq.s32.totalorder %s16, 3
      %p90 = scmp.ne.s32.totalorder %s85, %s87
      %p91 = scmp.eq.s32.totalorder %s16, 0
      %p92 = por %p90, %p91
      %p93 = scmp.ne.s32.totalorder %s85, %s87
      %p94 = scmp.eq.s32.totalorder %s21, 3
      %p95 = por %p93, %p94
      %p96 = scmp.ne.s32.totalorder %s87, %s88
      %p97 = scmp.eq.s32.totalorder %s21, 0
      %p98 = por %p96, %p97
      %p99 = scmp.ne.s32.totalorder %s87, %s88
      %p100 = scmp.eq.s32.totalorder %s22, 3
      %p101 = por %p99, %p100
      %p103 = scmp.ne.s32.totalorder %s88, %s102
      %p104 = scmp.eq.s32.totalorder %s22, 0
      %p105 = por %p103, %p104
      %s106 = ssub.s32 %s23, %s35
      %s107 = ssub.s32 %s24, %s31
      %s108 = sor.u32 %s106, %s107
      %p109 = scmp.eq.s32.totalorder %s108, 0
      %s111 = sadd.s32 %s110, 1
      %s112 = scalar_select %p109, %s110, %s111
      %p115 = pneg %p109
      %p116 = scmp.eq.s32.totalorder %s16, 3
      %p117 = por %p115, %p116
      %p118 = scmp.ne.s32.totalorder %s110, %s113
      %p119 = scmp.eq.s32.totalorder %s16, 0
      %p120 = por %p118, %p119
      %p121 = scmp.ne.s32.totalorder %s110, %s113
      %p122 = scmp.eq.s32.totalorder %s21, 3
      %p123 = por %p121, %p122
      %p124 = scmp.ne.s32.totalorder %s113, %s114
      %p125 = scmp.eq.s32.totalorder %s21, 0
      %p126 = por %p124, %p125
      %p127 = scmp.ne.s32.totalorder %s113, %s114
      %p128 = scmp.eq.s32.totalorder %s22, 3
      %p129 = por %p127, %p128
      %p131 = scmp.ne.s32.totalorder %s114, %s130
      %p132 = scmp.eq.s32.totalorder %s22, 0
      %p133 = por %p131, %p132
      %p134 = scmp.le.s32.totalorder 1, %s16
      %p135 = scmp.lt.s32.totalorder %s16, 5
      %p136 = pnand %p134, %p135
      %p137 = pneg %p136
      // Predicated region
      $region9: #{tpu_custom_call.1} parent=5 // pred_check
        _
      $region10: #{tpu_custom_call.1} parent=5 // pred_check_branch
        %139 = sbr.rel (%p136) target = $region12
      $region11: #{tpu_custom_call.1} parent=5 // pred_region
        %s140 = ssub.s32 %s16, 1
        // Predicated region
        $region13: #{tpu_custom_call.1} parent=11 // pred_check
          %p141 = pneg %p77
        $region14: #{tpu_custom_call.1} parent=11 // pred_check_branch
          %143 = sbr.rel (%p141) target = $region16
        $region15: #{tpu_custom_call.1} parent=11 // pred_region
          %s145 = ssub.s32 1024, 1024
          %146 = vsyncadd [#allocation6], %s145
          %s147 = sshll.u32 [#allocation5], 4
          %s148 = int_to_ptr.vmem [resolvable:$true] %s147
          %153 = dma.hbm_to_vmem [thread:$0]  %s1, 1024, %s148, [#allocation6], 64, 64, 4
        $region16: #{tpu_custom_call.1} parent=11 // pred_fallthru
          _
        // Predicated region
        $region17: #{tpu_custom_call.1} parent=11 // pred_check
          %p154 = pneg %p98
        $region18: #{tpu_custom_call.1} parent=11 // pred_check_branch
          %156 = sbr.rel (%p154) target = $region20
        $region19: #{tpu_custom_call.1} parent=11 // pred_region
          _
        $region20: #{tpu_custom_call.1} parent=11 // pred_fallthru
          _
      $region12: #{tpu_custom_call.1} parent=5 // pred_fallthru
        _
      %p157 = scmp.lt.s32.totalorder %s16, 4
      // Predicated region
      $region21: #{tpu_custom_call.1} parent=5 // pred_check
        %p158 = pneg %p157
      $region22: #{tpu_custom_call.1} parent=5 // pred_check_branch
        %160 = sbr.rel (%p158) target = $region24
      $region23: #{tpu_custom_call.1} parent=5 // pred_region
        // Predicated region
        $region25: #{tpu_custom_call.1} parent=23 // pred_check
          %p161 = pneg %p50
        $region26: #{tpu_custom_call.1} parent=23 // pred_check_branch
          %163 = sbr.rel (%p161) target = $region28
        $region27: #{tpu_custom_call.1} parent=23 // pred_region
          %s164 = sand.u32 %s40, 1
          %s165 = scalar_lea.sflag [#allocation3], %s164
          %s166 = sand.u32 %s40, 1
          %s167 = smul.addr %s166, 64
          %s168 = scalar_lea.vmem [#allocation2], %s167
          %s169 = smul.u32 16, %s24
          %s171 = ssub.s32 1024, 1024
          %172 = vsyncadd %s165, %s171
          %s173 = smul.addr %s23, 32
          %s174 = sadd.s32 %s169, %s173
          %s175 = smul.addr %s174, 64
          %s176 = scalar_lea.hbm %s0, %s175
          %s177 = sshll.u32 %s168, 4
          %s178 = int_to_ptr.vmem [resolvable:$true] %s177
          %183 = dma.hbm_to_vmem [thread:$0]  %s176, 1024, %s178, %s165, 64, 64, 4
        $region28: #{tpu_custom_call.1} parent=23 // pred_fallthru
          _
      $region24: #{tpu_custom_call.1} parent=5 // pred_fallthru
        _
      %p184 = scmp.le.s32.totalorder 1, %s16
      %p185 = scmp.lt.s32.totalorder %s16, 5
      %p186 = pnand %p184, %p185
      %p187 = pneg %p186
      // Predicated region
      $region29: #{tpu_custom_call.1} parent=5 // pred_check
        _
      $region30: #{tpu_custom_call.1} parent=5 // pred_check_branch
        %189 = sbr.rel (%p186) target = $region32
      $region31: #{tpu_custom_call.1} parent=5 // pred_region
        %s190 = ssub.s32 %s16, 1
        %s191 = sand.u32 %s43, 1
        %s192 = scalar_lea.sflag [#allocation3], %s191
        %s193 = sand.u32 %s43, 1
        %s194 = smul.addr %s193, 64
        %s195 = scalar_lea.vmem [#allocation2], %s194
        // Predicated region
        $region33: #{tpu_custom_call.1} parent=31 // pred_check
          %p196 = pneg %p56
        $region34: #{tpu_custom_call.1} parent=31 // pred_check_branch
          %198 = sbr.rel (%p196) target = $region36
        $region35: #{tpu_custom_call.1} parent=31 // pred_region
          %199 = dma.done %s192, 1024
        $region36: #{tpu_custom_call.1} parent=31 // pred_fallthru
          _
        // Predicated region
        $region37: #{tpu_custom_call.1} parent=31 // pred_check
          %p200 = pneg %p77
        $region38: #{tpu_custom_call.1} parent=31 // pred_check_branch
          %202 = sbr.rel (%p200) target = $region40
        $region39: #{tpu_custom_call.1} parent=31 // pred_region
          %203 = dma.done [#allocation6], 1024
        $region40: #{tpu_custom_call.1} parent=31 // pred_fallthru
          _
        %s204 = sand.u32 %s43, 1
        %s205 = scalar_lea.sflag [#allocation3], %s204
        %s206 = sand.u32 %s43, 1
        %s207 = smul.addr %s206, 64
        %s208 = scalar_lea.vmem [#allocation2], %s207
        %p209 = pneg %p56
        %p210 = pneg %p53
        %p211 = pneg %p77
        %p212 = pneg %p74
        %p213 = pneg %p98
        %p214 = pneg %p95
        %p215 = pneg %p126
        %p216 = pneg %p123
        %s217 = sand.u32 %s113, 1
        %s218 = scalar_lea.sflag [#allocation4], %s217
        %s219 = sand.u32 %s113, 1
        %s220 = smul.addr %s219, 64
        %s221 = scalar_lea.vmem [#allocation7], %s220
        %s222 = smul.u32 16, %s26
        %s223 = smul.u32 16, %s26
        %v225 = vld [vmem:[%s195] sm:$0xf]
        %v226 = vld [vmem:[%s195 + $0x4] sm:$0xf]
        %v227 = vld [vmem:[%s195 + $0x8] sm:$0xf]
        %v228 = vld [vmem:[%s195 + $0xc] sm:$0xf]
        %v229 = vld [vmem:[%s195 + $0x10] sm:$0xf]
        %v230 = vld [vmem:[%s195 + $0x14] sm:$0xf]
        %v231 = vld [vmem:[%s195 + $0x18] sm:$0xf]
        %v232 = vld [vmem:[%s195 + $0x1c] sm:$0xf]
        %v233 = vld [vmem:[%s195 + $0x20] sm:$0xf]
        %v234 = vld [vmem:[%s195 + $0x24] sm:$0xf]
        %v235 = vld [vmem:[%s195 + $0x28] sm:$0xf]
        %v236 = vld [vmem:[%s195 + $0x2c] sm:$0xf]
        %v237 = vld [vmem:[%s195 + $0x30] sm:$0xf]
        %v238 = vld [vmem:[%s195 + $0x34] sm:$0xf]
        %v239 = vld [vmem:[%s195 + $0x38] sm:$0xf]
        %v240 = vld [vmem:[%s195 + $0x3c] sm:$0xf]
        %v241 = vld [vmem:[#allocation5] sm:$0xf]
        %v242 = vld [vmem:[#allocation5 + $0x4] sm:$0xf]
        %v243 = vld [vmem:[#allocation5 + $0x8] sm:$0xf]
        %v244 = vld [vmem:[#allocation5 + $0xc] sm:$0xf]
        %v245 = vld [vmem:[#allocation5 + $0x10] sm:$0xf]
        %v246 = vld [vmem:[#allocation5 + $0x14] sm:$0xf]
        %v247 = vld [vmem:[#allocation5 + $0x18] sm:$0xf]
        %v248 = vld [vmem:[#allocation5 + $0x1c] sm:$0xf]
        %v249 = vld [vmem:[#allocation5 + $0x20] sm:$0xf]
        %v250 = vld [vmem:[#allocation5 + $0x24] sm:$0xf]
        %v251 = vld [vmem:[#allocation5 + $0x28] sm:$0xf]
        %v252 = vld [vmem:[#allocation5 + $0x2c] sm:$0xf]
        %v253 = vld [vmem:[#allocation5 + $0x30] sm:$0xf]
        %v254 = vld [vmem:[#allocation5 + $0x34] sm:$0xf]
        %v255 = vld [vmem:[#allocation5 + $0x38] sm:$0xf]
        %v256 = vld [vmem:[#allocation5 + $0x3c] sm:$0xf]
        %v257 = vld [vmem:[%s2] sm:$0x1]
        %v259 = vlaneseq
        %v260 = vshrl.u32 %v259, 7
        %v261 = vsub.s32 0, %v260
        %v262 = vrot.slane %v257, %v261
        %v280 = vunpack.c.l.b16 %v225
        %v281 = vunpack.c.l.b16 %v226
        %v282 = vunpack.c.l.b16 %v227
        %v283 = vunpack.c.l.b16 %v228
        %v284 = vunpack.c.l.b16 %v229
        %v285 = vunpack.c.l.b16 %v230
        %v286 = vunpack.c.l.b16 %v231
        %v287 = vunpack.c.l.b16 %v232
        %v288 = vunpack.c.l.b16 %v233
        %v289 = vunpack.c.l.b16 %v234
        %v290 = vunpack.c.l.b16 %v235
        %v291 = vunpack.c.l.b16 %v236
        %v292 = vunpack.c.l.b16 %v237
        %v293 = vunpack.c.l.b16 %v238
        %v294 = vunpack.c.l.b16 %v239
        %v295 = vunpack.c.l.b16 %v240
        %v296 = vpack.c.b16 %v281, %v280
        %v297 = vpack.c.b16 %v283, %v282
        %v298 = vpack.c.b16 %v285, %v284
        %v299 = vpack.c.b16 %v287, %v286
        %v300 = vpack.c.b16 %v289, %v288
        %v301 = vpack.c.b16 %v291, %v290
        %v302 = vpack.c.b16 %v293, %v292
        %v303 = vpack.c.b16 %v295, %v294
        %v328 = vunpack.c.l.b16 %v241
        %v329 = vunpack.c.l.b16 %v242
        %v330 = vunpack.c.l.b16 %v243
        %v331 = vunpack.c.l.b16 %v244
        %v332 = vunpack.c.l.b16 %v245
        %v333 = vunpack.c.l.b16 %v246
        %v334 = vunpack.c.l.b16 %v247
        %v335 = vunpack.c.l.b16 %v248
        %v336 = vunpack.c.l.b16 %v249
        %v337 = vunpack.c.l.b16 %v250
        %v338 = vunpack.c.l.b16 %v251
        %v339 = vunpack.c.l.b16 %v252
        %v340 = vunpack.c.l.b16 %v253
        %v341 = vunpack.c.l.b16 %v254
        %v342 = vunpack.c.l.b16 %v255
        %v343 = vunpack.c.l.b16 %v256
        %v344 = vpack.c.b16 %v329, %v328
        %v345 = vpack.c.b16 %v331, %v330
        %v346 = vpack.c.b16 %v333, %v332
        %v347 = vpack.c.b16 %v335, %v334
        %v348 = vpack.c.b16 %v337, %v336
        %v349 = vpack.c.b16 %v339, %v338
        %v350 = vpack.c.b16 %v341, %v340
        %v351 = vpack.c.b16 %v343, %v342
        %360 = vmatprep.subr.bf16.mxu0 0
        %361 = vmatpush1.bf16.msra.mxu0 %v344
        %362 = vmatprep.subr.bf16.mxu0 0
        %363 = vmatpush1.bf16.msra.mxu0 %v345
        %364 = vmatprep.subr.bf16.mxu0 0
        %365 = vmatpush1.bf16.msra.mxu0 %v346
        %366 = vmatprep.subr.bf16.mxu0 0
        %367 = vmatpush1.bf16.msra.mxu0 %v347
        %368 = vmatprep.subr.bf16.mxu0 0
        %369 = vmatpush1.bf16.msra.mxu0 %v348
        %370 = vmatprep.subr.bf16.mxu0 0
        %371 = vmatpush1.bf16.msra.mxu0 %v349
        %372 = vmatprep.subr.bf16.mxu0 0
        %373 = vmatpush1.bf16.msra.mxu0 %v350
        %374 = vmatprep.subr.bf16.mxu0 0
        %375 = vmatpush1.bf16.msra.mxu0 %v351
        %376 = vmatprep.subr.bf16.mxu0 0
        %377 = vmatpush1.bf16.msra.mxu0 0
        %378 = vmatprep.subr.bf16.mxu0 0
        %379 = vmatpush1.bf16.msra.mxu0 0
        %380 = vmatprep.subr.bf16.mxu0 0
        %381 = vmatpush1.bf16.msra.mxu0 0
        %382 = vmatprep.subr.bf16.mxu0 0
        %383 = vmatpush1.bf16.msra.mxu0 0
        %384 = vmatprep.subr.bf16.mxu0 0
        %385 = vmatpush1.bf16.msra.mxu0 0
        %386 = vmatprep.subr.bf16.mxu0 0
        %387 = vmatpush1.bf16.msra.mxu0 0
        %388 = vmatprep.subr.bf16.mxu0 0
        %389 = vmatpush1.bf16.msra.mxu0 0
        %390 = vmatprep.subr.bf16.mxu0 0
        %391 = vmatpush1.bf16.msra.mxu0 0
        %392 = vmatprep.mubr.bf16.mxu0 0
        %393 = vmatmul.mubr.bf16.gmra.mrb[0].mxu0 %v296
        %v394 = vpop.f32.mrb[0].mxu0
        %v395 = vadd.f32 %v262, %v394
        %v396 = vpop.f32.mrb[0].mxu0
        %v397 = vpop.f32.mrb[0].mxu0
        %v398 = vadd.f32 %v262, %v397
        %v399 = vpop.f32.mrb[0].mxu0
        %400 = vmatprep.mubr.bf16.mxu0 0
        %401 = vmatmul.mubr.bf16.gmra.mrb[0].mxu0 %v297
        %v402 = vpop.f32.mrb[0].mxu0
        %v403 = vadd.f32 %v262, %v402
        %v404 = vpop.f32.mrb[0].mxu0
        %v405 = vpop.f32.mrb[0].mxu0
        %v406 = vadd.f32 %v262, %v405
        %v407 = vpop.f32.mrb[0].mxu0
        %408 = vmatprep.mubr.bf16.mxu0 0
        %409 = vmatmul.mubr.bf16.gmra.mrb[0].mxu0 %v298
        %v410 = vpop.f32.mrb[0].mxu0
        %v411 = vadd.f32 %v262, %v410
        %v412 = vpop.f32.mrb[0].mxu0
        %v413 = vpop.f32.mrb[0].mxu0
        %v414 = vadd.f32 %v262, %v413
        %v415 = vpop.f32.mrb[0].mxu0
        %416 = vmatprep.mubr.bf16.mxu0 0
        %417 = vmatmul.mubr.bf16.gmra.mrb[0].mxu0 %v299
        %v418 = vpop.f32.mrb[0].mxu0
        %v419 = vadd.f32 %v262, %v418
        %v420 = vpop.f32.mrb[0].mxu0
        %v421 = vpop.f32.mrb[0].mxu0
        %v422 = vadd.f32 %v262, %v421
        %v423 = vpop.f32.mrb[0].mxu0
        %424 = vmatprep.mubr.bf16.mxu0 0
        %425 = vmatmul.mubr.bf16.gmra.mrb[0].mxu0 %v300
        %v426 = vpop.f32.mrb[0].mxu0
        %v427 = vadd.f32 %v262, %v426
        %v428 = vpop.f32.mrb[0].mxu0
        %v429 = vpop.f32.mrb[0].mxu0
        %v430 = vadd.f32 %v262, %v429
        %v431 = vpop.f32.mrb[0].mxu0
        %432 = vmatprep.mubr.bf16.mxu0 0
        %433 = vmatmul.mubr.bf16.gmra.mrb[0].mxu0 %v301
        %v434 = vpop.f32.mrb[0].mxu0
        %v435 = vadd.f32 %v262, %v434
        %v436 = vpop.f32.mrb[0].mxu0
        %v437 = vpop.f32.mrb[0].mxu0
        %v438 = vadd.f32 %v262, %v437
        %v439 = vpop.f32.mrb[0].mxu0
        %440 = vmatprep.mubr.bf16.mxu0 0
        %441 = vmatmul.mubr.bf16.gmra.mrb[0].mxu0 %v302
        %v442 = vpop.f32.mrb[0].mxu0
        %v443 = vadd.f32 %v262, %v442
        %v444 = vpop.f32.mrb[0].mxu0
        %v445 = vpop.f32.mrb[0].mxu0
        %v446 = vadd.f32 %v262, %v445
        %v447 = vpop.f32.mrb[0].mxu0
        %448 = vmatprep.mubr.bf16.mxu0 0
        %449 = vmatmul.mubr.bf16.gmra.mrb[0].mxu0 %v303
        %v450 = vpop.f32.mrb[0].mxu0
        %v451 = vadd.f32 %v262, %v450
        %v452 = vpop.f32.mrb[0].mxu0
        %v453 = vpop.f32.mrb[0].mxu0
        %v454 = vadd.f32 %v262, %v453
        %v455 = vpop.f32.mrb[0].mxu0
        %456 = vdwg.mxu0
        %v457 = vmax.f32 %v395, 0.0
        %v458 = vmax.f32 %v398, 0.0
        %v459 = vmax.f32 %v403, 0.0
        %v460 = vmax.f32 %v406, 0.0
        %v461 = vmax.f32 %v411, 0.0
        %v462 = vmax.f32 %v414, 0.0
        %v463 = vmax.f32 %v419, 0.0
        %v464 = vmax.f32 %v422, 0.0
        %v465 = vmax.f32 %v427, 0.0
        %v466 = vmax.f32 %v430, 0.0
        %v467 = vmax.f32 %v435, 0.0
        %v468 = vmax.f32 %v438, 0.0
        %v469 = vmax.f32 %v443, 0.0
        %v470 = vmax.f32 %v446, 0.0
        %v471 = vmax.f32 %v451, 0.0
        %v472 = vmax.f32 %v454, 0.0
        %v473 = vpack.c.bf16 %v458, %v457
        %v474 = vpack.c.bf16 %v460, %v459
        %v475 = vpack.c.bf16 %v462, %v461
        %v476 = vpack.c.bf16 %v464, %v463
        %v477 = vpack.c.bf16 %v466, %v465
        %v478 = vpack.c.bf16 %v468, %v467
        %v479 = vpack.c.bf16 %v470, %v469
        %v480 = vpack.c.bf16 %v472, %v471
        %v489 = vunpack.c.l.b16 %v473
        %v490 = vunpack.c.h.b16 %v473
        %v491 = vunpack.c.l.b16 %v474
        %v492 = vunpack.c.h.b16 %v474
        %v493 = vunpack.c.l.b16 %v475
        %v494 = vunpack.c.h.b16 %v475
        %v495 = vunpack.c.l.b16 %v476
        %v496 = vunpack.c.h.b16 %v476
        %v497 = vunpack.c.l.b16 %v477
        %v498 = vunpack.c.h.b16 %v477
        %v499 = vunpack.c.l.b16 %v478
        %v500 = vunpack.c.h.b16 %v478
        %v501 = vunpack.c.l.b16 %v479
        %v502 = vunpack.c.h.b16 %v479
        %v503 = vunpack.c.l.b16 %v480
        %v504 = vunpack.c.h.b16 %v480
        %v505 = vpack.c.b16 %v489, %v489
        %v506 = vpack.c.b16 %v490, %v490
        %v507 = vpack.c.b16 %v491, %v491
        %v508 = vpack.c.b16 %v492, %v492
        %v509 = vpack.c.b16 %v493, %v493
        %v510 = vpack.c.b16 %v494, %v494
        %v511 = vpack.c.b16 %v495, %v495
        %v512 = vpack.c.b16 %v496, %v496
        %v513 = vpack.c.b16 %v497, %v497
        %v514 = vpack.c.b16 %v498, %v498
        %v515 = vpack.c.b16 %v499, %v499
        %v516 = vpack.c.b16 %v500, %v500
        %v517 = vpack.c.b16 %v501, %v501
        %v518 = vpack.c.b16 %v502, %v502
        %v519 = vpack.c.b16 %v503, %v503
        %v520 = vpack.c.b16 %v504, %v504
        %537 = vst [vmem:[%s221] sm:$0xf] %v505
        %538 = vst [vmem:[%s221 + $0x4] sm:$0xf] %v506
        %539 = vst [vmem:[%s221 + $0x8] sm:$0xf] %v507
        %540 = vst [vmem:[%s221 + $0xc] sm:$0xf] %v508
        %541 = vst [vmem:[%s221 + $0x10] sm:$0xf] %v509
        %542 = vst [vmem:[%s221 + $0x14] sm:$0xf] %v510
        %543 = vst [vmem:[%s221 + $0x18] sm:$0xf] %v511
        %544 = vst [vmem:[%s221 + $0x1c] sm:$0xf] %v512
        %545 = vst [vmem:[%s221 + $0x20] sm:$0xf] %v513
        %546 = vst [vmem:[%s221 + $0x24] sm:$0xf] %v514
        %547 = vst [vmem:[%s221 + $0x28] sm:$0xf] %v515
        %548 = vst [vmem:[%s221 + $0x2c] sm:$0xf] %v516
        %549 = vst [vmem:[%s221 + $0x30] sm:$0xf] %v517
        %550 = vst [vmem:[%s221 + $0x34] sm:$0xf] %v518
        %551 = vst [vmem:[%s221 + $0x38] sm:$0xf] %v519
        %552 = vst [vmem:[%s221 + $0x3c] sm:$0xf] %v520
        %s553 = sand.u32 %s113, 1
        %s554 = scalar_lea.sflag [#allocation4], %s553
        %s555 = sand.u32 %s113, 1
        %s556 = smul.addr %s555, 64
        %s557 = scalar_lea.vmem [#allocation7], %s556
        // Predicated region
        $region41: #{tpu_custom_call.1} parent=31 // pred_check
          %p558 = pneg %p123
        $region42: #{tpu_custom_call.1} parent=31 // pred_check_branch
          %560 = sbr.rel (%p558) target = $region44
        $region43: #{tpu_custom_call.1} parent=31 // pred_region
          %s561 = smul.u32 16, %s26
          %s563 = ssub.s32 1024, 1024
          %564 = vsyncadd %s554, %s563
          %s565 = smul.addr %s25, 32
          %s566 = sadd.s32 %s561, %s565
          %s567 = smul.addr %s566, 64
          %s568 = scalar_lea.hbm %s3, %s567
          %s569 = sshll.u32 %s557, 4
          %s570 = int_to_ptr.vmem [resolvable:$true] %s569
          %575 = dma.vmem_to_hbm [thread:$0]  %s570, 1024, %s568, %s554, 64, 64, 4
        $region44: #{tpu_custom_call.1} parent=31 // pred_fallthru
          _
      $region32: #{tpu_custom_call.1} parent=5 // pred_fallthru
        _
      %p576 = scmp.le.s32.totalorder 2, %s16
      // Predicated region
      $region45: #{tpu_custom_call.1} parent=5 // pred_check
        %p577 = pneg %p576
      $region46: #{tpu_custom_call.1} parent=5 // pred_check_branch
        %579 = sbr.rel (%p577) target = $region48
      $region47: #{tpu_custom_call.1} parent=5 // pred_region
        %s580 = ssub.s32 %s16, 2
        // Predicated region
        $region49: #{tpu_custom_call.1} parent=47 // pred_check
          %p581 = pneg %p129
        $region50: #{tpu_custom_call.1} parent=47 // pred_check_branch
          %583 = sbr.rel (%p581) target = $region52
        $region51: #{tpu_custom_call.1} parent=47 // pred_region
          %s584 = sand.u32 %s114, 1
          %s585 = scalar_lea.sflag [#allocation4], %s584
          %s586 = sand.u32 %s114, 1
          %s587 = smul.addr %s586, 64
          %s588 = scalar_lea.vmem [#allocation7], %s587
          %589 = dma.done %s585, 1024
        $region52: #{tpu_custom_call.1} parent=47 // pred_fallthru
          _
      $region48: #{tpu_custom_call.1} parent=5 // pred_fallthru
        _
    $region6: #{tpu_custom_call.1} parent=1 // loop_footer
      %s20 = sadd.s32 1, %s16
    $region7: #{tpu_custom_call.1} parent=1 // loop_footer_branch
      %15 = sbr.rel target = $region3
    $region8: #{tpu_custom_call.1} parent=1 // loop_exit
      _
    %590 = vsyncpa [#allocation3], 1
    %s591 = scalar_lea.sflag [#allocation3], 1
    %592 = vsyncpa %s591, 1
    %593 = vsyncpa [#allocation6], 1
    %594 = vsyncpa [#allocation4], 1
    %s595 = scalar_lea.sflag [#allocation4], 1
    %596 = vsyncpa %s595, 1

</llo_original>
